<compile_context>
chip_gen: v7x
topology: tpu7x:2x2x1
jax: 0.10.0
libtpu: 0.0.40
codegen_flags: <defaults>
</compile_context>

<pallas_src>
import functools

import jax
import jax.numpy as jnp
from jax import lax
from jax.experimental import pallas as pl
from jax.experimental.pallas import tpu as pltpu


def _linear_kernel(x_ref, w_ref, b_ref, o_ref):
    # x_ref : (TM, D)      VMEM tile (one batch tile; last tile may be ragged)
    # w_ref : (N_pad, D)   VMEM tile (full weight, PyTorch (out, in) layout)
    # b_ref : (1, N_pad)   VMEM tile (f32 bias)
    # o_ref : (TM, N_pad)  VMEM tile (lane-dense output)
    x = x_ref[...]
    w = w_ref[...]
    if x.dtype != w.dtype:
        # Cast after the DMA: bf16 MXU operands at zero extra HBM cost.
        x = x.astype(w.dtype)
    acc = lax.dot_general(
        x, w,
        dimension_numbers=(((1,), (1,)), ((), ())),  # contract D with D (x @ W.T)
        preferred_element_type=jnp.float32,
    )
    o_ref[...] = (acc + b_ref[...]).astype(o_ref.dtype)


def prepare_d_lin1_params(w, b, *, compute_dtype=None):
    """One-time parameter prep (hoisted out of the per-call hot path).

    Pads n_classes up to a multiple of 128 (lane-dense output stores), reshapes
    the bias to (1, n_pad) f32, and optionally pre-casts the weight to a
    narrower MXU operand dtype (e.g. bf16).

    Returns (w_padded, b_padded, n_classes).
    """
    n_classes, conv_dim = w.shape
    assert b.shape == (n_classes,)
    n_pad = ((n_classes + 127) // 128) * 128
    if n_pad != n_classes:
        w = jnp.pad(w, ((0, n_pad - n_classes), (0, 0)))
        b = jnp.pad(b, (0, n_pad - n_classes))
    if compute_dtype is not None:
        w = w.astype(compute_dtype)
    b2 = b.reshape(1, n_pad).astype(jnp.float32)
    return w, b2, n_classes


@functools.partial(jax.jit, static_argnames=("n_classes", "block_m", "return_padded"))
def d_lin1_forward(x, w_padded, b_padded, n_classes, *, block_m=1024,
                   return_padded=False):
    """y = x @ W.T + b with W/b pre-padded by `prepare_d_lin1_params`.

    x: (B, conv_dim) f32 (or bf16 if the producer already emits bf16)
    w_padded: (n_pad, conv_dim), b_padded: (1, n_pad) f32, n_pad % 128 == 0.
    """
    B, D = x.shape
    n_pad, D2 = w_padded.shape
    assert D == D2, "conv_dim mismatch"
    assert n_pad % 128 == 0 and b_padded.shape == (1, n_pad)

    out_dtype = x.dtype

    # Batch tile: multiple of 8, aiming for >=4 grid steps (megacore + pipeline
    # overlap on v7x), capped at block_m.  No batch padding of x: Pallas masks
    # the partial last block's output stores.
    tm = min(block_m, max(8, ((pl.cdiv(B, 4) + 7) // 8) * 8))
    grid = (pl.cdiv(B, tm),)

    x_itemsize = jnp.dtype(x.dtype).itemsize
    w_itemsize = jnp.dtype(w_padded.dtype).itemsize
    cost = pl.CostEstimate(
        flops=2 * B * D * n_pad,
        transcendentals=0,
        bytes_accessed=(B * D * x_itemsize                       # x
                        + n_pad * D * w_itemsize                 # w (resident)
                        + n_pad * 4                              # b
                        + B * n_pad * jnp.dtype(out_dtype).itemsize),  # y
    )

    y = pl.pallas_call(
        _linear_kernel,
        out_shape=jax.ShapeDtypeStruct((B, n_pad), out_dtype),
        grid=grid,
        in_specs=[
            pl.BlockSpec((tm, D), lambda i: (i, 0)),      # x batch tile
            pl.BlockSpec((n_pad, D), lambda i: (0, 0)),   # full weight, resident
            pl.BlockSpec((1, n_pad), lambda i: (0, 0)),   # full bias, resident
        ],
        out_specs=pl.BlockSpec((tm, n_pad), lambda i: (i, 0)),
        compiler_params=pltpu.CompilerParams(
            dimension_semantics=("parallel",),
        ),
        cost_estimate=cost,
    )(x, w_padded, b_padded)

    if return_padded:
        # Lane-dense (B, n_pad) result; slice where it can fuse downstream.
        return y
    return y[:, :n_classes]


if __name__ == "__main__":
    # Small shapes consistent with the module: conv_dim=64, n_classes=32, batch=8.
    B, conv_dim, n_classes = 8, 64, 32

    key = jax.random.PRNGKey(0)
    kx, kw, kb = jax.random.split(key, 3)

    x = jax.random.normal(kx, (B, conv_dim), dtype=jnp.float32)
    # Deterministic param init (mimics Linear's uniform(-1/sqrt(fan_in), ...)).
    bound = 1.0 / (conv_dim ** 0.5)
    w = jax.random.uniform(kw, (n_classes, conv_dim), jnp.float32, -bound, bound)
    b = jax.random.uniform(kb, (n_classes,), jnp.float32, -bound, bound)

    y_ref = x @ w.T + b

    # --- f32 path (params prepared once, outside the hot loop) --------------
    w_p, b_p, n_cls = prepare_d_lin1_params(w, b)
    y = jax.block_until_ready(d_lin1_forward(x, w_p, b_p, n_cls))
    assert y.shape == (B, n_classes)
    assert jnp.allclose(y, y_ref, atol=1e-5, rtol=1e-5), "f32 mismatch vs reference"

    # --- ragged batch (B not a multiple of the tile): exercises masked stores
    B2 = 20
    x2 = jax.random.normal(jax.random.PRNGKey(1), (B2, conv_dim), dtype=jnp.float32)
    y2_ref = x2 @ w.T + b
    y2 = jax.block_until_ready(d_lin1_forward(x2, w_p, b_p, n_cls))
    assert y2.shape == (B2, n_classes)
    assert jnp.allclose(y2, y2_ref, atol=1e-5, rtol=1e-5), "ragged-B mismatch vs reference"

    # --- bf16-weight path: w pre-cast at init, x cast inside the kernel ------
    w_p16, b_p16, _ = prepare_d_lin1_params(w, b, compute_dtype=jnp.bfloat16)
    y_bf16 = jax.block_until_ready(d_lin1_forward(x, w_p16, b_p16, n_cls))
    assert y_bf16.shape == (B, n_classes)
    assert jnp.allclose(y_bf16, y_ref, atol=5e-2, rtol=5e-2), "bf16 mismatch vs reference"

    print("KERNEL_OK")
</pallas_src>

<mosaic_0001>
module attributes {stable_mosaic.version = 11 : i64} {
  func.func @_linear_kernel(%arg0: i32, %arg1: memref<8x64xf32, #tpu.memory_space<vmem>>, %arg2: memref<128x64xf32, #tpu.memory_space<vmem>>, %arg3: memref<1x128xf32, #tpu.memory_space<vmem>>, %arg4: memref<8x128xf32, #tpu.memory_space<vmem>>) attributes {dimension_semantics = [#tpu.dimension_semantics<parallel>], iteration_bounds = array<i64: 1>, scalar_prefetch = 0 : i64, scratch_operands = 0 : i64, tpu.core_type = #tpu.core_type<tc>, window_params = [{transform_indices = @transform_0, window_bounds = array<i64: 8, 64>}, {pipeline_mode = #tpu.pipeline_mode<synchronous>, transform_indices = @transform_1, window_bounds = array<i64: 128, 64>}, {pipeline_mode = #tpu.pipeline_mode<synchronous>, transform_indices = @transform_2, window_bounds = array<i64: 1, 128>}, {transform_indices = @transform_3, window_bounds = array<i64: 8, 128>}]} {
    %c0 = arith.constant 0 : index
    %c0_0 = arith.constant 0 : index
    %0 = vector.load %arg1[%c0, %c0_0] : memref<8x64xf32, #tpu.memory_space<vmem>>, vector<8x64xf32>
    %c0_1 = arith.constant 0 : index
    %c0_2 = arith.constant 0 : index
    %1 = vector.load %arg2[%c0_1, %c0_2] : memref<128x64xf32, #tpu.memory_space<vmem>>, vector<128x64xf32>
    %cst = arith.constant dense<0.000000e+00> : vector<8x128xf32>
    %2 = tpu.matmul %0, %1, %cst {dimension_numbers = #tpu.dot_dimension_numbers<[1], [1], [0], [0], [0, 0, 1, 0], [], []>} : vector<8x64xf32>, vector<128x64xf32>, vector<8x128xf32> -> vector<8x128xf32>
    %c0_3 = arith.constant 0 : index
    %c0_4 = arith.constant 0 : index
    %3 = vector.load %arg3[%c0_3, %c0_4] : memref<1x128xf32, #tpu.memory_space<vmem>>, vector<1x128xf32>
    %4 = vector.broadcast %3 : vector<1x128xf32> to vector<8x128xf32>
    %5 = arith.addf %2, %4 : vector<8x128xf32>
    %c0_5 = arith.constant 0 : index
    %c0_6 = arith.constant 0 : index
    %6 = vector.load %arg4[%c0_5, %c0_6] : memref<8x128xf32, #tpu.memory_space<vmem>>, vector<8x128xf32>
    tpu.vector_store %arg4[%c0_5, %c0_6], %5 {strides = array<i32>} : memref<8x128xf32, #tpu.memory_space<vmem>>, vector<8x128xf32>,
    return
  }
  func.func @transform_0(%arg0: i32) -> (i32, i32) {
    %c0_i32 = arith.constant 0 : i32
    %c0_i32_0 = arith.constant 0 : i32
    return %arg0, %c0_i32 : i32, i32
  }
  func.func @transform_1(%arg0: i32) -> (i32, i32) {
    %c0_i32 = arith.constant 0 : i32
    %c0_i32_0 = arith.constant 0 : i32
    %c0_i32_1 = arith.constant 0 : i32
    return %c0_i32, %c0_i32_0 : i32, i32
  }
  func.func @transform_2(%arg0: i32) -> (i32, i32) {
    %c0_i32 = arith.constant 0 : i32
    %c0_i32_0 = arith.constant 0 : i32
    %c0_i32_1 = arith.constant 0 : i32
    return %c0_i32, %c0_i32_0 : i32, i32
  }
  func.func @transform_3(%arg0: i32) -> (i32, i32) {
    %c0_i32 = arith.constant 0 : i32
    %c0_i32_0 = arith.constant 0 : i32
    return %arg0, %c0_i32 : i32, i32
  }
}

</mosaic_0001>

<llo_original>
// kernel: d_lin1_forward.1
$region0: #{d_lin1_forward.1}
  #allocation0 [shape = 'u32[]', space=smem, size = 0x4, offset = 0x4, fixed_abs, tag = 'smem constant byte address 0x4 - core index']
  #allocation1 [shape = 'u32[144,128]{1,0:T(1,128)}', space=vmem, size = 0x12000, scoped, tag = 'internal scratch']
  %s0 = inlined_call_operand.vmem [shape: f32[8,64], index: 0, kind: input, shape index: {}]
  %s1 = inlined_call_operand.vmem [shape: f32[128,64], index: 1, kind: input, shape index: {}]
  %s2 = inlined_call_operand.vmem [shape: f32[1,128], index: 2, kind: input, shape index: {}]
  %s3 = inlined_call_operand.hbm [shape: f32[8,128], index: 3, kind: output, shape index: {}]
  %s4 = sld [smem:[#allocation0]]
  $region22: #{d_lin1_forward.1} parent=0
    _
  %s6 = ssub.s32 1, %s4
  %s7 = scalar_select 0, %s6, %s4
  $region1: #{d_lin1_forward.1} parent=0
    #allocation2 [shape = 'u8[4096]{0}', space=vmem, size = 0x1000, scoped, tag = 'output window, operand 0, single buffered']
    #allocation3 [shape = 's32[1]{0}', space=sflag, size = 0x4, scoped, tag = 'scoped memory for d_lin1_forward.1']
    %8 = vsyncpa [#allocation3], 0
    // Predicated region
    $region2: #{d_lin1_forward.1} parent=1 // pred_check
      _
    $region3: #{d_lin1_forward.1} parent=1 // pred_check_branch
      %10 = sbr.rel (0) target = $region5
    $region4: #{d_lin1_forward.1} parent=1 // pred_region
      _
    $region5: #{d_lin1_forward.1} parent=1 // pred_fallthru
      _
    // Predicated region
    $region6: #{d_lin1_forward.1} parent=1 // pred_check
      _
    $region7: #{d_lin1_forward.1} parent=1 // pred_check_branch
      %12 = sbr.rel (0) target = $region9
    $region8: #{d_lin1_forward.1} parent=1 // pred_region
      _
    $region9: #{d_lin1_forward.1} parent=1 // pred_fallthru
      _
    // Predicated region
    $region10: #{d_lin1_forward.1} parent=1 // pred_check
      _
    $region11: #{d_lin1_forward.1} parent=1 // pred_check_branch
      %14 = sbr.rel (0) target = $region13
    $region12: #{d_lin1_forward.1} parent=1 // pred_region
      _
    $region13: #{d_lin1_forward.1} parent=1 // pred_fallthru
      _
    %v15 = vld [vmem:[%s0] sm:$0xff]
    %v16 = vld [vmem:[%s1] sm:$0xff]
    %v17 = vld [vmem:[%s1 + $0x8] sm:$0xff]
    %v18 = vld [vmem:[%s1 + $0x10] sm:$0xff]
    %v19 = vld [vmem:[%s1 + $0x18] sm:$0xff]
    %v20 = vld [vmem:[%s1 + $0x20] sm:$0xff]
    %v21 = vld [vmem:[%s1 + $0x28] sm:$0xff]
    %v22 = vld [vmem:[%s1 + $0x30] sm:$0xff]
    %v23 = vld [vmem:[%s1 + $0x38] sm:$0xff]
    %v24 = vld [vmem:[%s1 + $0x40] sm:$0xff]
    %v25 = vld [vmem:[%s1 + $0x48] sm:$0xff]
    %v26 = vld [vmem:[%s1 + $0x50] sm:$0xff]
    %v27 = vld [vmem:[%s1 + $0x58] sm:$0xff]
    %v28 = vld [vmem:[%s1 + $0x60] sm:$0xff]
    %v29 = vld [vmem:[%s1 + $0x68] sm:$0xff]
    %v30 = vld [vmem:[%s1 + $0x70] sm:$0xff]
    %v31 = vld [vmem:[%s1 + $0x78] sm:$0xff]
    %v32 = vld [vmem:[%s2] sm:$0x1]
    %v34 = vlaneseq
    %v35 = vshrl.u32 %v34, 7
    %v36 = vsub.s32 0, %v35
    %v37 = vrot.slane %v32, %v36
    %vm39 = vcmask 523264
    %v41 = vsel %vm39, %v15, 0
    %v44 = vsel %vm39, %v16, 0
    %v47 = vsel %vm39, %v17, 0
    %v50 = vsel %vm39, %v18, 0
    %v53 = vsel %vm39, %v19, 0
    %v56 = vsel %vm39, %v20, 0
    %v59 = vsel %vm39, %v21, 0
    %v62 = vsel %vm39, %v22, 0
    %v65 = vsel %vm39, %v23, 0
    %v68 = vsel %vm39, %v24, 0
    %v71 = vsel %vm39, %v25, 0
    %v74 = vsel %vm39, %v26, 0
    %v77 = vsel %vm39, %v27, 0
    %v80 = vsel %vm39, %v28, 0
    %v83 = vsel %vm39, %v29, 0
    %v86 = vsel %vm39, %v30, 0
    %v89 = vsel %vm39, %v31, 0
    %91 = vmatprep.subr.mxu0 0.0
    %92 = vmatpush1.xpose.msra.mxu0 %v44
    %93 = vmatprep.subr.mxu0 0.0
    %94 = vmatpush1.xpose.msra.mxu0 %v47
    %95 = vmatprep.subr.mxu0 0.0
    %96 = vmatpush1.xpose.msra.mxu0 %v50
    %97 = vmatprep.subr.mxu0 0.0
    %98 = vmatpush1.xpose.msra.mxu0 %v53
    %99 = vmatprep.subr.mxu0 0.0
    %100 = vmatpush1.xpose.msra.mxu0 %v56
    %101 = vmatprep.subr.mxu0 0.0
    %102 = vmatpush1.xpose.msra.mxu0 %v59
    %103 = vmatprep.subr.mxu0 0.0
    %104 = vmatpush1.xpose.msra.mxu0 %v62
    %105 = vmatprep.subr.mxu0 0.0
    %106 = vmatpush1.xpose.msra.mxu0 %v65
    %107 = vmatprep.subr.mxu0 0.0
    %108 = vmatpush1.xpose.msra.mxu0 %v68
    %109 = vmatprep.subr.mxu0 0.0
    %110 = vmatpush1.xpose.msra.mxu0 %v71
    %111 = vmatprep.subr.mxu0 0.0
    %112 = vmatpush1.xpose.msra.mxu0 %v74
    %113 = vmatprep.subr.mxu0 0.0
    %114 = vmatpush1.xpose.msra.mxu0 %v77
    %115 = vmatprep.subr.mxu0 0.0
    %116 = vmatpush1.xpose.msra.mxu0 %v80
    %117 = vmatprep.subr.mxu0 0.0
    %118 = vmatpush1.xpose.msra.mxu0 %v83
    %119 = vmatprep.subr.mxu0 0.0
    %120 = vmatpush1.xpose.msra.mxu0 %v86
    %121 = vmatprep.subr.mxu0 0.0
    %122 = vmatpush1.xpose.msra.mxu0 %v89
    %123 = vmatprep.subr.mxu0 0.0
    %124 = vmatpush1.xpose.msra.mxu0 0.0
    %125 = vmatprep.subr.mxu0 0.0
    %126 = vmatpush1.xpose.msra.mxu0 0.0
    %127 = vmatprep.subr.mxu0 0.0
    %128 = vmatpush1.xpose.msra.mxu0 0.0
    %129 = vmatprep.subr.mxu0 0.0
    %130 = vmatpush1.xpose.msra.mxu0 0.0
    %131 = vmatprep.subr.mxu0 0.0
    %132 = vmatpush1.xpose.msra.mxu0 0.0
    %133 = vmatprep.subr.mxu0 0.0
    %134 = vmatpush1.xpose.msra.mxu0 0.0
    %135 = vmatprep.subr.mxu0 0.0
    %136 = vmatpush1.xpose.msra.mxu0 0.0
    %137 = vmatprep.subr.mxu0 0.0
    %138 = vmatpush1.xpose.msra.mxu0 0.0
    %139 = vmatprep.subr.mxu0 0.0
    %140 = vmatpush1.xpose.msra.mxu0 0.0
    %141 = vmatprep.subr.mxu0 0.0
    %142 = vmatpush1.xpose.msra.mxu0 0.0
    %143 = vmatprep.subr.mxu0 0.0
    %144 = vmatpush1.xpose.msra.mxu0 0.0
    %145 = vmatprep.subr.mxu0 0.0
    %146 = vmatpush1.xpose.msra.mxu0 0.0
    %147 = vmatprep.subr.mxu0 0.0
    %148 = vmatpush1.xpose.msra.mxu0 0.0
    %149 = vmatprep.subr.mxu0 0.0
    %150 = vmatpush1.xpose.msra.mxu0 0.0
    %151 = vmatprep.subr.mxu0 0.0
    %152 = vmatpush1.xpose.msra.mxu0 0.0
    %153 = vmatprep.subr.mxu0 0.0
    %154 = vmatpush1.xpose.msra.mxu0 0.0
    %155 = vmatprep.mubr.f32.mxu0 0.0
    %156 = vmatmul.mubr.f32.gmra.mrb[0].mxu0 %v41
    %v157 = vpop.f32.mrb[0].mxu0
    %v158 = vadd.f32 %v37, %v157
    %v159 = vpop.f32.mrb[0].mxu0
    %160 = vdwg.mxu0
    %161 = vst [vmem:[#allocation2] sm:$0xff] %v158
    // Predicated region
    $region14: #{d_lin1_forward.1} parent=1 // pred_check
      _
    $region15: #{d_lin1_forward.1} parent=1 // pred_check_branch
      %163 = sbr.rel (0) target = $region17
    $region16: #{d_lin1_forward.1} parent=1 // pred_region
      %s165 = ssub.s32 128, 128
      %166 = vsyncadd [#allocation3], %s165
      %s168 = sshll.u32 [#allocation2], 4
      %s169 = int_to_ptr.vmem [resolvable:$true] %s168
      %171 = dma.vmem_to_hbm [thread:$0]  %s169, 128, %s3, [#allocation3]
    $region17: #{d_lin1_forward.1} parent=1 // pred_fallthru
      _
    // Predicated region
    $region18: #{d_lin1_forward.1} parent=1 // pred_check
      _
    $region19: #{d_lin1_forward.1} parent=1 // pred_check_branch
      %173 = sbr.rel (0) target = $region21
    $region20: #{d_lin1_forward.1} parent=1 // pred_region
      %174 = dma.done [#allocation3], 128
    $region21: #{d_lin1_forward.1} parent=1 // pred_fallthru
      _
    %175 = vsyncpa [#allocation3], 1

</llo_original>
